<compile_context>
chip_gen: v5e
topology: v5e:2x2
jax: 0.10.0
libtpu: 0.0.40
codegen_flags: <defaults>
</compile_context>

<pallas_src>
import functools

import jax
import jax.numpy as jnp
from jax.experimental import pallas as pl
from jax.experimental.pallas import tpu as pltpu


def _round_up(x, m):
    return (x + m - 1) // m * m


# ----------------------------------------------------------------------------
# Pallas kernel: tiled  y = x @ w + b
# ----------------------------------------------------------------------------
def _linear_bias_kernel(x_ref, w_ref, b_ref, o_ref, acc_ref):
    k = pl.program_id(2)

    @pl.when(k == 0)
    def _():
        acc_ref[...] = jnp.zeros_like(acc_ref)

    acc_ref[...] += jnp.dot(
        x_ref[...], w_ref[...], preferred_element_type=jnp.float32
    )

    @pl.when(k == pl.num_programs(2) - 1)
    def _():
        o_ref[...] = (acc_ref[...] + b_ref[...]).astype(o_ref.dtype)


def linear(x, w, b):
    """y = x @ w + b.

    x: (M, K), w: (K, N), b: (N,) -> (M, N).
    Pads M->mult of 8, K/N->mult of 128 (zero padding, exact result), tiles the
    grid (M, N, K) with K innermost for the accumulator pattern.
    """
    M, K = x.shape
    Kw, N = w.shape
    assert K == Kw and b.shape == (N,)

    # ---- tile selection (lane-dense, VMEM-friendly on all generations) ----
    Mp8 = _round_up(M, 8)
    Np128 = _round_up(N, 128)
    Kp128 = _round_up(K, 128)

    tm = min(Mp8, 256)
    tn = min(Np128, 256)
    tk = Kp128 if Kp128 <= 1024 else 512

    Mp = _round_up(M, tm)
    Np = _round_up(N, tn)
    Kp = _round_up(K, tk)

    # zero-padding keeps the matmul exact; padded bias lanes are sliced off.
    xp = jnp.pad(x, ((0, Mp - M), (0, Kp - K)))
    wp = jnp.pad(w, ((0, Kp - K), (0, Np - N)))
    bp = jnp.pad(b, (0, Np - N)).reshape(1, Np)

    out = pl.pallas_call(
        _linear_bias_kernel,
        out_shape=jax.ShapeDtypeStruct((Mp, Np), x.dtype),
        grid_spec=pltpu.PrefetchScalarGridSpec(
            num_scalar_prefetch=0,
            grid=(Mp // tm, Np // tn, Kp // tk),
            in_specs=[
                pl.BlockSpec((tm, tk), lambda i, j, k: (i, k)),
                pl.BlockSpec((tk, tn), lambda i, j, k: (k, j)),
                pl.BlockSpec((1, tn), lambda i, j, k: (0, j)),
            ],
            out_specs=pl.BlockSpec((tm, tn), lambda i, j, k: (i, j)),
            scratch_shapes=[pltpu.VMEM((tm, tn), jnp.float32)],
        ),
        compiler_params=pltpu.CompilerParams(
            dimension_semantics=("parallel", "parallel", "arbitrary")
        ),
    )(xp, wp, bp)
    return out[:M, :N]


# ----------------------------------------------------------------------------
# LSTMSeq forward + params
# ----------------------------------------------------------------------------
IN_FEATURES = 275 * 4  # hard-coded in the PyTorch module: nn.Linear(275*4, out_size)


def init_params(key, out_size):
    kw, _ = jax.random.split(key)
    # nn.Linear weight is (out, in) in PyTorch; store as (in, out) here —
    # mathematically identical forward.
    w = 0.02 * jax.random.normal(kw, (IN_FEATURES, out_size), dtype=jnp.float32)
    b = jnp.zeros((out_size,), jnp.float32)
    return {"w": w, "b": b}


@functools.partial(jax.jit, static_argnames=())
def lstm_seq_forward(params, x):
    """x: (B, ...) with prod(...) == 275*4.  Returns (B, out_size)."""
    B = x.shape[0]
    flat = x.reshape(B, -1)  # x.view(B, -1)
    return linear(flat, params["w"], params["b"])  # self.l1(x)


# ----------------------------------------------------------------------------
# Demo
# ----------------------------------------------------------------------------
if __name__ == "__main__":
    B = 2
    out_size = 128  # lane-dense output width

    key = jax.random.PRNGKey(0)
    k_param, k_in = jax.random.split(key)

    params = init_params(k_param, out_size)
    # input shaped (B, 275, 4) so the flatten gives exactly 275*4 features,
    # matching the module's hard-coded nn.Linear(275 * 4, out_size).
    x = jax.random.normal(k_in, (B, 275, 4), dtype=jnp.float32)

    out = lstm_seq_forward(params, x)
    out = jax.block_until_ready(out)

    assert out.shape == (B, out_size)
    assert bool(jnp.all(jnp.isfinite(out)))

    # reference check (loose tolerance: TPU f32 matmuls use multi-pass bf16)
    ref = x.reshape(B, -1) @ params["w"] + params["b"]
    assert bool(jnp.allclose(out, ref, rtol=1e-2, atol=1e-2))

    print("KERNEL_OK")
</pallas_src>

<mosaic_0001>
module attributes {stable_mosaic.version = 11 : i64} {
  func.func @_linear_bias_kernel(%arg0: i32, %arg1: i32, %arg2: i32, %arg3: memref<8x512xf32, #tpu.memory_space<vmem>>, %arg4: memref<512x128xf32, #tpu.memory_space<vmem>>, %arg5: memref<1x128xf32, #tpu.memory_space<vmem>>, %arg6: memref<8x128xf32, #tpu.memory_space<vmem>>, %arg7: memref<8x128xf32, #tpu.memory_space<vmem>>) attributes {dimension_semantics = [#tpu.dimension_semantics<parallel>, #tpu.dimension_semantics<parallel>, #tpu.dimension_semantics<arbitrary>], iteration_bounds = array<i64: 1, 1, 3>, scalar_prefetch = 0 : i64, scratch_operands = 1 : i64, tpu.core_type = #tpu.core_type<tc>, window_params = [{transform_indices = @transform_0, window_bounds = array<i64: 8, 512>}, {transform_indices = @transform_1, window_bounds = array<i64: 512, 128>}, {transform_indices = @transform_2, window_bounds = array<i64: 1, 128>}, {transform_indices = @transform_3, window_bounds = array<i64: 8, 128>}]} {
    %c0_i32 = arith.constant 0 : i32
    %0 = arith.cmpi eq, %arg2, %c0_i32 : i32
    %1 = arith.extui %0 : i1 to i32
    %c0_i32_0 = arith.constant 0 : i32
    %2 = arith.cmpi ne, %1, %c0_i32_0 : i32
    scf.if %2 {
      %cst_9 = arith.constant 0.000000e+00 : f32
      %12 = vector.broadcast %cst_9 : f32 to vector<8x128xf32>
      %c0_10 = arith.constant 0 : index
      %c0_11 = arith.constant 0 : index
      %13 = vector.load %arg7[%c0_10, %c0_11] : memref<8x128xf32, #tpu.memory_space<vmem>>, vector<8x128xf32>
      tpu.vector_store %arg7[%c0_10, %c0_11], %12 {strides = array<i32>} : memref<8x128xf32, #tpu.memory_space<vmem>>, vector<8x128xf32>,
    } else {
    }
    %c0 = arith.constant 0 : index
    %c0_1 = arith.constant 0 : index
    %3 = vector.load %arg7[%c0, %c0_1] : memref<8x128xf32, #tpu.memory_space<vmem>>, vector<8x128xf32>
    %c0_2 = arith.constant 0 : index
    %c0_3 = arith.constant 0 : index
    %4 = vector.load %arg3[%c0_2, %c0_3] : memref<8x512xf32, #tpu.memory_space<vmem>>, vector<8x512xf32>
    %c0_4 = arith.constant 0 : index
    %c0_5 = arith.constant 0 : index
    %5 = vector.load %arg4[%c0_4, %c0_5] : memref<512x128xf32, #tpu.memory_space<vmem>>, vector<512x128xf32>
    %cst = arith.constant dense<0.000000e+00> : vector<8x128xf32>
    %6 = tpu.matmul %4, %5, %cst {dimension_numbers = #tpu.dot_dimension_numbers<[1], [0], [0], [1], [0, 0, 1, 1], [], []>} : vector<8x512xf32>, vector<512x128xf32>, vector<8x128xf32> -> vector<8x128xf32>
    %7 = arith.addf %3, %6 : vector<8x128xf32>
    %c0_6 = arith.constant 0 : index
    %c0_7 = arith.constant 0 : index
    %8 = vector.load %arg7[%c0_6, %c0_7] : memref<8x128xf32, #tpu.memory_space<vmem>>, vector<8x128xf32>
    tpu.vector_store %arg7[%c0_6, %c0_7], %7 {strides = array<i32>} : memref<8x128xf32, #tpu.memory_space<vmem>>, vector<8x128xf32>,
    %c2_i32 = arith.constant 2 : i32
    %9 = arith.cmpi eq, %arg2, %c2_i32 : i32
    %10 = arith.extui %9 : i1 to i32
    %c0_i32_8 = arith.constant 0 : i32
    %11 = arith.cmpi ne, %10, %c0_i32_8 : i32
    scf.if %11 {
      %c0_9 = arith.constant 0 : index
      %c0_10 = arith.constant 0 : index
      %12 = vector.load %arg7[%c0_9, %c0_10] : memref<8x128xf32, #tpu.memory_space<vmem>>, vector<8x128xf32>
      %c0_11 = arith.constant 0 : index
      %c0_12 = arith.constant 0 : index
      %13 = vector.load %arg5[%c0_11, %c0_12] : memref<1x128xf32, #tpu.memory_space<vmem>>, vector<1x128xf32>
      %14 = vector.broadcast %13 : vector<1x128xf32> to vector<8x128xf32>
      %15 = arith.addf %12, %14 : vector<8x128xf32>
      %c0_13 = arith.constant 0 : index
      %c0_14 = arith.constant 0 : index
      %16 = vector.load %arg6[%c0_13, %c0_14] : memref<8x128xf32, #tpu.memory_space<vmem>>, vector<8x128xf32>
      tpu.vector_store %arg6[%c0_13, %c0_14], %15 {strides = array<i32>} : memref<8x128xf32, #tpu.memory_space<vmem>>, vector<8x128xf32>,
    } else {
    }
    return
  }
  func.func @transform_0(%arg0: i32, %arg1: i32, %arg2: i32) -> (i32, i32) {
    %c0_i32 = arith.constant 0 : i32
    return %arg0, %arg2 : i32, i32
  }
  func.func @transform_1(%arg0: i32, %arg1: i32, %arg2: i32) -> (i32, i32) {
    %c0_i32 = arith.constant 0 : i32
    return %arg2, %arg1 : i32, i32
  }
  func.func @transform_2(%arg0: i32, %arg1: i32, %arg2: i32) -> (i32, i32) {
    %c0_i32 = arith.constant 0 : i32
    %c0_i32_0 = arith.constant 0 : i32
    return %c0_i32, %arg1 : i32, i32
  }
  func.func @transform_3(%arg0: i32, %arg1: i32, %arg2: i32) -> (i32, i32) {
    %c0_i32 = arith.constant 0 : i32
    return %arg0, %arg1 : i32, i32
  }
}

</mosaic_0001>

<llo_original>
// kernel: lstm_seq_forward.1
$region0: #{lstm_seq_forward.1}
  #allocation0 [shape = 'u32[]', space=smem, size = 0x4, offset = 0x4, fixed_abs, tag = 'smem constant byte address 0x4 - core index']
  #allocation1 [shape = 'u32[72,128]{1,0:T(1,128)}', space=vmem, size = 0x9000, scoped, tag = 'internal scratch']
  #allocation2 [shape = 'f32[8,128]{1,0:T(8,128)}', space=vmem, size = 0x1000, scoped, tag = 'scratch operand']
  %s0 = inlined_call_operand.vmem [shape: f32[8,1536], index: 0, kind: input, shape index: {}]
  %s1 = inlined_call_operand.vmem [shape: f32[1536,128], index: 1, kind: input, shape index: {}]
  %s2 = inlined_call_operand.vmem [shape: f32[1,128], index: 2, kind: input, shape index: {}]
  %s3 = inlined_call_operand.vmem [shape: f32[8,128], index: 3, kind: output, shape index: {}]
  %s4 = sld [smem:[#allocation0]]
  $region53: #{lstm_seq_forward.1} parent=0
    _
  %s6 = ssub.s32 1, %s4
  %s7 = scalar_select 0, %s6, %s4
  loop: start=0, step=1, limit=5
  $region2: #{lstm_seq_forward.1} parent=0 // loop_pre_header
    _
  $region3: #{lstm_seq_forward.1} parent=0 // loop_header
    %s9 = sphi 0, %s13
    %p10 = scmp.ge.s32.totalorder %s9, 5
    %s16 = sphi 0, %s35
    %s17 = sphi 0, %s31
    %s18 = sphi 0, %s27
    %s19 = sphi 0, %s16
    %s20 = sphi 0, %s17
    %s21 = sphi 0, %s18
    %s22 = sphi 0, %s19
    %s23 = sphi 0, %s20
    %s24 = sphi 0, %s21
    %s40 = sphi 0, %s42
    %s43 = sphi 0, %s40
    %s44 = sphi 0, %s43
    %s60 = sphi 0, %s44
    %s68 = sphi 0, %s70
    %s71 = sphi 0, %s68
    %s72 = sphi 0, %s71
    %s88 = sphi 0, %s72
    %s94 = sphi 0, %s96
    %s97 = sphi 0, %s94
    %s98 = sphi 0, %s97
    %s114 = sphi 0, %s98
    %s122 = sphi 0, %s124
    %s125 = sphi 0, %s122
    %s126 = sphi 0, %s125
    %s142 = sphi 0, %s126
  $region4: #{lstm_seq_forward.1} parent=0 // loop_header_branch
    %12 = sbr.rel (%p10) target = $region8
  $region5: #{lstm_seq_forward.1} parent=0 // loop_body
    %s14 = ssub.s32 %s9, 1
    %s15 = ssub.s32 %s9, 2
    %s25 = sadd.s32 1, %s18
    %p26 = scmp.ge.s32.totalorder %s25, 3
    %s27 = scalar_select %p26, 0, %s25
    %s28 = sadd.s32 1, %s17
    %s29 = scalar_select %p26, %s28, %s17
    %p30 = scmp.ge.s32.totalorder %s29, 1
    %s31 = scalar_select %p30, 0, %s29
    %s32 = sadd.s32 1, %s16
    %s33 = scalar_select %p30, %s32, %s16
    %p34 = scmp.ge.s32.totalorder %s33, 1
    %s35 = scalar_select %p34, 0, %s33
    %s36 = ssub.s32 %s16, %s35
    %s37 = ssub.s32 %s18, %s27
    %s38 = sor.u32 %s36, %s37
    %p39 = scmp.eq.s32.totalorder %s38, 0
    %s41 = sadd.s32 %s40, 1
    %s42 = scalar_select %p39, %s40, %s41
    %p45 = pneg %p39
    %p46 = scmp.eq.s32.totalorder %s9, 2
    %p47 = por %p45, %p46
    %p48 = scmp.ne.s32.totalorder %s40, %s43
    %p49 = scmp.eq.s32.totalorder %s9, 0
    %p50 = por %p48, %p49
    %p51 = scmp.ne.s32.totalorder %s40, %s43
    %p52 = scmp.eq.s32.totalorder %s14, 2
    %p53 = por %p51, %p52
    %p54 = scmp.ne.s32.totalorder %s43, %s44
    %p55 = scmp.eq.s32.totalorder %s14, 0
    %p56 = por %p54, %p55
    %p57 = scmp.ne.s32.totalorder %s43, %s44
    %p58 = scmp.eq.s32.totalorder %s15, 2
    %p59 = por %p57, %p58
    %p61 = scmp.ne.s32.totalorder %s44, %s60
    %p62 = scmp.eq.s32.totalorder %s15, 0
    %p63 = por %p61, %p62
    %s64 = ssub.s32 %s18, %s27
    %s65 = ssub.s32 %s17, %s31
    %s66 = sor.u32 %s64, %s65
    %p67 = scmp.eq.s32.totalorder %s66, 0
    %s69 = sadd.s32 %s68, 1
    %s70 = scalar_select %p67, %s68, %s69
    %p73 = pneg %p67
    %p74 = scmp.eq.s32.totalorder %s9, 2
    %p75 = por %p73, %p74
    %p76 = scmp.ne.s32.totalorder %s68, %s71
    %p77 = scmp.eq.s32.totalorder %s9, 0
    %p78 = por %p76, %p77
    %p79 = scmp.ne.s32.totalorder %s68, %s71
    %p80 = scmp.eq.s32.totalorder %s14, 2
    %p81 = por %p79, %p80
    %p82 = scmp.ne.s32.totalorder %s71, %s72
    %p83 = scmp.eq.s32.totalorder %s14, 0
    %p84 = por %p82, %p83
    %p85 = scmp.ne.s32.totalorder %s71, %s72
    %p86 = scmp.eq.s32.totalorder %s15, 2
    %p87 = por %p85, %p86
    %p89 = scmp.ne.s32.totalorder %s72, %s88
    %p90 = scmp.eq.s32.totalorder %s15, 0
    %p91 = por %p89, %p90
    %s92 = ssub.s32 %s17, %s31
    %p93 = scmp.eq.s32.totalorder %s92, 0
    %s95 = sadd.s32 %s94, 1
    %s96 = scalar_select %p93, %s94, %s95
    %p99 = pneg %p93
    %p100 = scmp.eq.s32.totalorder %s9, 2
    %p101 = por %p99, %p100
    %p102 = scmp.ne.s32.totalorder %s94, %s97
    %p103 = scmp.eq.s32.totalorder %s9, 0
    %p104 = por %p102, %p103
    %p105 = scmp.ne.s32.totalorder %s94, %s97
    %p106 = scmp.eq.s32.totalorder %s14, 2
    %p107 = por %p105, %p106
    %p108 = scmp.ne.s32.totalorder %s97, %s98
    %p109 = scmp.eq.s32.totalorder %s14, 0
    %p110 = por %p108, %p109
    %p111 = scmp.ne.s32.totalorder %s97, %s98
    %p112 = scmp.eq.s32.totalorder %s15, 2
    %p113 = por %p111, %p112
    %p115 = scmp.ne.s32.totalorder %s98, %s114
    %p116 = scmp.eq.s32.totalorder %s15, 0
    %p117 = por %p115, %p116
    %s118 = ssub.s32 %s16, %s35
    %s119 = ssub.s32 %s17, %s31
    %s120 = sor.u32 %s118, %s119
    %p121 = scmp.eq.s32.totalorder %s120, 0
    %s123 = sadd.s32 %s122, 1
    %s124 = scalar_select %p121, %s122, %s123
    %p127 = pneg %p121
    %p128 = scmp.eq.s32.totalorder %s9, 2
    %p129 = por %p127, %p128
    %p130 = scmp.ne.s32.totalorder %s122, %s125
    %p131 = scmp.eq.s32.totalorder %s9, 0
    %p132 = por %p130, %p131
    %p133 = scmp.ne.s32.totalorder %s122, %s125
    %p134 = scmp.eq.s32.totalorder %s14, 2
    %p135 = por %p133, %p134
    %p136 = scmp.ne.s32.totalorder %s125, %s126
    %p137 = scmp.eq.s32.totalorder %s14, 0
    %p138 = por %p136, %p137
    %p139 = scmp.ne.s32.totalorder %s125, %s126
    %p140 = scmp.eq.s32.totalorder %s15, 2
    %p141 = por %p139, %p140
    %p143 = scmp.ne.s32.totalorder %s126, %s142
    %p144 = scmp.eq.s32.totalorder %s15, 0
    %p145 = por %p143, %p144
    %p146 = scmp.le.s32.totalorder 1, %s9
    %p147 = scmp.lt.s32.totalorder %s9, 4
    %p148 = pnand %p146, %p147
    %p149 = pneg %p148
    // Predicated region
    $region9: #{lstm_seq_forward.1} parent=5 // pred_check
      _
    $region10: #{lstm_seq_forward.1} parent=5 // pred_check_branch
      %151 = sbr.rel (%p148) target = $region12
    $region11: #{lstm_seq_forward.1} parent=5 // pred_region
      %s152 = ssub.s32 %s9, 1
      // Predicated region
      $region13: #{lstm_seq_forward.1} parent=11 // pred_check
        %p153 = pneg %p110
      $region14: #{lstm_seq_forward.1} parent=11 // pred_check_branch
        %155 = sbr.rel (%p153) target = $region16
      $region15: #{lstm_seq_forward.1} parent=11 // pred_region
        %p156 = scmp.lt.s32.totalorder %s20, 0
        %s157 = scalar_select %p156, %s20, 0
        %s158 = scalar_lea.vmem %s2, %s157
      $region16: #{lstm_seq_forward.1} parent=11 // pred_fallthru
        _
    $region12: #{lstm_seq_forward.1} parent=5 // pred_fallthru
      _
    %p159 = scmp.lt.s32.totalorder %s9, 3
    // Predicated region
    $region17: #{lstm_seq_forward.1} parent=5 // pred_check
      %p160 = pneg %p159
    $region18: #{lstm_seq_forward.1} parent=5 // pred_check_branch
      %162 = sbr.rel (%p160) target = $region20
    $region19: #{lstm_seq_forward.1} parent=5 // pred_region
      // Predicated region
      $region21: #{lstm_seq_forward.1} parent=19 // pred_check
        %p163 = pneg %p50
      $region22: #{lstm_seq_forward.1} parent=19 // pred_check_branch
        %165 = sbr.rel (%p163) target = $region24
      $region23: #{lstm_seq_forward.1} parent=19 // pred_region
        %s166 = smul.u32 4, %s18
        %p167 = scmp.lt.s32.totalorder %s16, 0
        %s168 = scalar_select %p167, %s16, 0
        %p169 = scmp.lt.s32.totalorder %s166, 11
        %s170 = scalar_select %p169, %s166, 11
        %s171 = smul.addr %s168, 12
        %s172 = sadd.s32 %s170, %s171
        %s173 = smul.addr %s172, 8
        %s174 = scalar_lea.vmem %s0, %s173
        %s175 = smul.u32 4, %s18
      $region24: #{lstm_seq_forward.1} parent=19 // pred_fallthru
        _
      // Predicated region
      $region25: #{lstm_seq_forward.1} parent=19 // pred_check
        %p176 = pneg %p78
      $region26: #{lstm_seq_forward.1} parent=19 // pred_check_branch
        %178 = sbr.rel (%p176) target = $region28
      $region27: #{lstm_seq_forward.1} parent=19 // pred_region
        %s179 = smul.u32 64, %s18
        %p180 = scmp.lt.s32.totalorder %s179, 191
        %s181 = scalar_select %p180, %s179, 191
        %p182 = scmp.lt.s32.totalorder %s17, 0
        %s183 = scalar_select %p182, %s17, 0
        %s184 = sadd.s32 %s183, %s181
        %s185 = smul.addr %s184, 8
        %s186 = scalar_lea.vmem %s1, %s185
        %s187 = smul.u32 64, %s18
      $region28: #{lstm_seq_forward.1} parent=19 // pred_fallthru
        _
    $region20: #{lstm_seq_forward.1} parent=5 // pred_fallthru
      _
    %p188 = scmp.le.s32.totalorder 1, %s9
    %p189 = scmp.lt.s32.totalorder %s9, 4
    %p190 = pnand %p188, %p189
    %p191 = pneg %p190
    // Predicated region
    $region29: #{lstm_seq_forward.1} parent=5 // pred_check
      _
    $region30: #{lstm_seq_forward.1} parent=5 // pred_check_branch
      %193 = sbr.rel (%p190) target = $region32
    $region31: #{lstm_seq_forward.1} parent=5 // pred_region
      %s194 = ssub.s32 %s9, 1
      %s195 = smul.u32 4, %s21
      %p196 = scmp.lt.s32.totalorder %s19, 0
      %s197 = scalar_select %p196, %s19, 0
      %p198 = scmp.lt.s32.totalorder %s195, 11
      %s199 = scalar_select %p198, %s195, 11
      %s200 = smul.addr %s197, 12
      %s201 = sadd.s32 %s199, %s200
      %s202 = smul.addr %s201, 8
      %s203 = scalar_lea.vmem %s0, %s202
      %p204 = pneg %p56
      %p205 = pneg %p53
      %s206 = smul.u32 64, %s21
      %p207 = scmp.lt.s32.totalorder %s206, 191
      %s208 = scalar_select %p207, %s206, 191
      %p209 = scmp.lt.s32.totalorder %s20, 0
      %s210 = scalar_select %p209, %s20, 0
      %s211 = sadd.s32 %s210, %s208
      %s212 = smul.addr %s211, 8
      %s213 = scalar_lea.vmem %s1, %s212
      %p214 = pneg %p84
      %p215 = pneg %p81
      %p216 = scmp.lt.s32.totalorder %s20, 0
      %s217 = scalar_select %p216, %s20, 0
      %s218 = scalar_lea.vmem %s2, %s217
      %p219 = pneg %p110
      %p220 = pneg %p107
      %p221 = pneg %p138
      %p222 = pneg %p135
      %p223 = scmp.lt.s32.totalorder %s19, 0
      %s224 = scalar_select %p223, %s19, 0
      %p225 = scmp.lt.s32.totalorder %s20, 0
      %s226 = scalar_select %p225, %s20, 0
      %s227 = sadd.s32 %s226, %s224
      %s228 = smul.addr %s227, 8
      %s229 = scalar_lea.vmem %s3, %s228
      %s230 = smul.u32 4, %s21
      %p231 = scmp.lt.s32.totalorder %s19, 0
      %s232 = scalar_select %p231, %s19, 0
      %p233 = scmp.lt.s32.totalorder %s230, 11
      %s234 = scalar_select %p233, %s230, 11
      %s235 = smul.addr %s232, 12
      %s236 = sadd.s32 %s234, %s235
      %s237 = smul.addr %s236, 8
      %s238 = scalar_lea.vmem %s0, %s237
      %s239 = smul.u32 4, %s21
      %s240 = smul.u32 64, %s21
      %p241 = scmp.lt.s32.totalorder %s240, 191
      %s242 = scalar_select %p241, %s240, 191
      %p243 = scmp.lt.s32.totalorder %s20, 0
      %s244 = scalar_select %p243, %s20, 0
      %s245 = sadd.s32 %s244, %s242
      %s246 = smul.addr %s245, 8
      %s247 = scalar_lea.vmem %s1, %s246
      %s248 = smul.u32 64, %s21
      %p249 = scmp.lt.s32.totalorder %s20, 0
      %s250 = scalar_select %p249, %s20, 0
      %s251 = scalar_lea.vmem %s2, %s250
      %p252 = scmp.lt.s32.totalorder %s19, 0
      %s253 = scalar_select %p252, %s19, 0
      %p254 = scmp.lt.s32.totalorder %s20, 0
      %s255 = scalar_select %p254, %s20, 0
      %s256 = sadd.s32 %s255, %s253
      %s257 = smul.addr %s256, 8
      %s258 = scalar_lea.vmem %s3, %s257
      %p259 = scmp.eq.s32.totalorder %s21, 0
      // Predicated region
      $region33: #{lstm_seq_forward.1} parent=31 // pred_check
        %p260 = pneg %p259
      $region34: #{lstm_seq_forward.1} parent=31 // pred_check_branch
        %262 = sbr.rel (%p260) target = $region36
      $region35: #{lstm_seq_forward.1} parent=31 // pred_region
        %263 = vst [vmem:[#allocation2] sm:$0xff] 0.0
      $region36: #{lstm_seq_forward.1} parent=31 // pred_fallthru
        _
      %v264 = vld [vmem:[#allocation2] sm:$0xff]
      %v265 = vld [vmem:[%s238] sm:$0xff]
      %v266 = vld [vmem:[%s238 + $0x8] sm:$0xff]
      %v267 = vld [vmem:[%s238 + $0x10] sm:$0xff]
      %v268 = vld [vmem:[%s238 + $0x18] sm:$0xff]
      %v269 = vld [vmem:[%s247] sm:$0xff]
      %v270 = vld [vmem:[%s247 + $0x8] sm:$0xff]
      %v271 = vld [vmem:[%s247 + $0x10] sm:$0xff]
      %v272 = vld [vmem:[%s247 + $0x18] sm:$0xff]
      %v273 = vld [vmem:[%s247 + $0x20] sm:$0xff]
      %v274 = vld [vmem:[%s247 + $0x28] sm:$0xff]
      %v275 = vld [vmem:[%s247 + $0x30] sm:$0xff]
      %v276 = vld [vmem:[%s247 + $0x38] sm:$0xff]
      %v277 = vld [vmem:[%s247 + $0x40] sm:$0xff]
      %v278 = vld [vmem:[%s247 + $0x48] sm:$0xff]
      %v279 = vld [vmem:[%s247 + $0x50] sm:$0xff]
      %v280 = vld [vmem:[%s247 + $0x58] sm:$0xff]
      %v281 = vld [vmem:[%s247 + $0x60] sm:$0xff]
      %v282 = vld [vmem:[%s247 + $0x68] sm:$0xff]
      %v283 = vld [vmem:[%s247 + $0x70] sm:$0xff]
      %v284 = vld [vmem:[%s247 + $0x78] sm:$0xff]
      %v285 = vld [vmem:[%s247 + $0x80] sm:$0xff]
      %v286 = vld [vmem:[%s247 + $0x88] sm:$0xff]
      %v287 = vld [vmem:[%s247 + $0x90] sm:$0xff]
      %v288 = vld [vmem:[%s247 + $0x98] sm:$0xff]
      %v289 = vld [vmem:[%s247 + $0xa0] sm:$0xff]
      %v290 = vld [vmem:[%s247 + $0xa8] sm:$0xff]
      %v291 = vld [vmem:[%s247 + $0xb0] sm:$0xff]
      %v292 = vld [vmem:[%s247 + $0xb8] sm:$0xff]
      %v293 = vld [vmem:[%s247 + $0xc0] sm:$0xff]
      %v294 = vld [vmem:[%s247 + $0xc8] sm:$0xff]
      %v295 = vld [vmem:[%s247 + $0xd0] sm:$0xff]
      %v296 = vld [vmem:[%s247 + $0xd8] sm:$0xff]
      %v297 = vld [vmem:[%s247 + $0xe0] sm:$0xff]
      %v298 = vld [vmem:[%s247 + $0xe8] sm:$0xff]
      %v299 = vld [vmem:[%s247 + $0xf0] sm:$0xff]
      %v300 = vld [vmem:[%s247 + $0xf8] sm:$0xff]
      %v301 = vld [vmem:[%s247 + $0x100] sm:$0xff]
      %v302 = vld [vmem:[%s247 + $0x108] sm:$0xff]
      %v303 = vld [vmem:[%s247 + $0x110] sm:$0xff]
      %v304 = vld [vmem:[%s247 + $0x118] sm:$0xff]
      %v305 = vld [vmem:[%s247 + $0x120] sm:$0xff]
      %v306 = vld [vmem:[%s247 + $0x128] sm:$0xff]
      %v307 = vld [vmem:[%s247 + $0x130] sm:$0xff]
      %v308 = vld [vmem:[%s247 + $0x138] sm:$0xff]
      %v309 = vld [vmem:[%s247 + $0x140] sm:$0xff]
      %v310 = vld [vmem:[%s247 + $0x148] sm:$0xff]
      %v311 = vld [vmem:[%s247 + $0x150] sm:$0xff]
      %v312 = vld [vmem:[%s247 + $0x158] sm:$0xff]
      %v313 = vld [vmem:[%s247 + $0x160] sm:$0xff]
      %v314 = vld [vmem:[%s247 + $0x168] sm:$0xff]
      %v315 = vld [vmem:[%s247 + $0x170] sm:$0xff]
      %v316 = vld [vmem:[%s247 + $0x178] sm:$0xff]
      %v317 = vld [vmem:[%s247 + $0x180] sm:$0xff]
      %v318 = vld [vmem:[%s247 + $0x188] sm:$0xff]
      %v319 = vld [vmem:[%s247 + $0x190] sm:$0xff]
      %v320 = vld [vmem:[%s247 + $0x198] sm:$0xff]
      %v321 = vld [vmem:[%s247 + $0x1a0] sm:$0xff]
      %v322 = vld [vmem:[%s247 + $0x1a8] sm:$0xff]
      %v323 = vld [vmem:[%s247 + $0x1b0] sm:$0xff]
      %v324 = vld [vmem:[%s247 + $0x1b8] sm:$0xff]
      %v325 = vld [vmem:[%s247 + $0x1c0] sm:$0xff]
      %v326 = vld [vmem:[%s247 + $0x1c8] sm:$0xff]
      %v327 = vld [vmem:[%s247 + $0x1d0] sm:$0xff]
      %v328 = vld [vmem:[%s247 + $0x1d8] sm:$0xff]
      %v329 = vld [vmem:[%s247 + $0x1e0] sm:$0xff]
      %v330 = vld [vmem:[%s247 + $0x1e8] sm:$0xff]
      %v331 = vld [vmem:[%s247 + $0x1f0] sm:$0xff]
      %v332 = vld [vmem:[%s247 + $0x1f8] sm:$0xff]
      %333 = vmatpush.msra.mxu0 %v284
      %334 = vmatpush.msra.mxu0 %v283
      %335 = vmatpush.msra.mxu0 %v282
      %336 = vmatpush.msra.mxu0 %v281
      %337 = vmatpush.msra.mxu0 %v280
      %338 = vmatpush.msra.mxu0 %v279
      %339 = vmatpush.msra.mxu0 %v278
      %340 = vmatpush.msra.mxu0 %v277
      %341 = vmatpush.msra.mxu0 %v276
      %342 = vmatpush.msra.mxu0 %v275
      %343 = vmatpush.msra.mxu0 %v274
      %344 = vmatpush.msra.mxu0 %v273
      %345 = vmatpush.msra.mxu0 %v272
      %346 = vmatpush.msra.mxu0 %v271
      %347 = vmatpush.msra.mxu0 %v270
      %348 = vmatpush.msra.mxu0 %v269
      %349 = vmatmul.f32.gmra.mxu0 %v265
      %v350 = vpop.f32.mrf.mxu0
      %v351 = vadd.f32 0.0, %v350
      %352 = vdwg.mxu0
      %353 = vmatpush.msra.mxu0 %v300
      %354 = vmatpush.msra.mxu0 %v299
      %355 = vmatpush.msra.mxu0 %v298
      %356 = vmatpush.msra.mxu0 %v297
      %357 = vmatpush.msra.mxu0 %v296
      %358 = vmatpush.msra.mxu0 %v295
      %359 = vmatpush.msra.mxu0 %v294
      %360 = vmatpush.msra.mxu0 %v293
      %361 = vmatpush.msra.mxu0 %v292
      %362 = vmatpush.msra.mxu0 %v291
      %363 = vmatpush.msra.mxu0 %v290
      %364 = vmatpush.msra.mxu0 %v289
      %365 = vmatpush.msra.mxu0 %v288
      %366 = vmatpush.msra.mxu0 %v287
      %367 = vmatpush.msra.mxu0 %v286
      %368 = vmatpush.msra.mxu0 %v285
      %369 = vmatmul.f32.gmra.mxu0 %v266
      %v370 = vpop.f32.mrf.mxu0
      %v371 = vadd.f32 %v351, %v370
      %372 = vdwg.mxu0
      %373 = vmatpush.msra.mxu0 %v316
      %374 = vmatpush.msra.mxu0 %v315
      %375 = vmatpush.msra.mxu0 %v314
      %376 = vmatpush.msra.mxu0 %v313
      %377 = vmatpush.msra.mxu0 %v312
      %378 = vmatpush.msra.mxu0 %v311
      %379 = vmatpush.msra.mxu0 %v310
      %380 = vmatpush.msra.mxu0 %v309
      %381 = vmatpush.msra.mxu0 %v308
      %382 = vmatpush.msra.mxu0 %v307
      %383 = vmatpush.msra.mxu0 %v306
      %384 = vmatpush.msra.mxu0 %v305
      %385 = vmatpush.msra.mxu0 %v304
      %386 = vmatpush.msra.mxu0 %v303
      %387 = vmatpush.msra.mxu0 %v302
      %388 = vmatpush.msra.mxu0 %v301
      %389 = vmatmul.f32.gmra.mxu0 %v267
      %v390 = vpop.f32.mrf.mxu0
      %v391 = vadd.f32 %v371, %v390
      %392 = vdwg.mxu0
      %393 = vmatpush.msra.mxu0 %v332
      %394 = vmatpush.msra.mxu0 %v331
      %395 = vmatpush.msra.mxu0 %v330
      %396 = vmatpush.msra.mxu0 %v329
      %397 = vmatpush.msra.mxu0 %v328
      %398 = vmatpush.msra.mxu0 %v327
      %399 = vmatpush.msra.mxu0 %v326
      %400 = vmatpush.msra.mxu0 %v325
      %401 = vmatpush.msra.mxu0 %v324
      %402 = vmatpush.msra.mxu0 %v323
      %403 = vmatpush.msra.mxu0 %v322
      %404 = vmatpush.msra.mxu0 %v321
      %405 = vmatpush.msra.mxu0 %v320
      %406 = vmatpush.msra.mxu0 %v319
      %407 = vmatpush.msra.mxu0 %v318
      %408 = vmatpush.msra.mxu0 %v317
      %409 = vmatmul.f32.gmra.mxu0 %v268
      %v410 = vpop.f32.mrf.mxu0
      %v411 = vadd.f32 %v391, %v410
      %412 = vdwg.mxu0
      %v413 = vadd.f32 %v264, %v411
      %414 = vst [vmem:[#allocation2] sm:$0xff] %v413
      %p415 = scmp.eq.s32.totalorder %s21, 2
      // Predicated region
      $region37: #{lstm_seq_forward.1} parent=31 // pred_check
        %p416 = pneg %p415
      $region38: #{lstm_seq_forward.1} parent=31 // pred_check_branch
        %418 = sbr.rel (%p416) target = $region40
      $region39: #{lstm_seq_forward.1} parent=31 // pred_region
        %v419 = vld [vmem:[#allocation2] sm:$0xff]
        %v420 = vld [vmem:[%s251] sm:$0x1]
        %v422 = vperm.slane %v420, 0
        %v424 = vadd.f32 %v419, %v422
        %425 = vst [vmem:[%s258] sm:$0xff] %v424
      $region40: #{lstm_seq_forward.1} parent=31 // pred_fallthru
        _
      %p426 = scmp.lt.s32.totalorder %s19, 0
      %s427 = scalar_select %p426, %s19, 0
      %p428 = scmp.lt.s32.totalorder %s20, 0
      %s429 = scalar_select %p428, %s20, 0
      %s430 = sadd.s32 %s429, %s427
      %s431 = smul.addr %s430, 8
      %s432 = scalar_lea.vmem %s3, %s431
      // Predicated region
      $region41: #{lstm_seq_forward.1} parent=31 // pred_check
        %p433 = pneg %p135
      $region42: #{lstm_seq_forward.1} parent=31 // pred_check_branch
        %435 = sbr.rel (%p433) target = $region44
      $region43: #{lstm_seq_forward.1} parent=31 // pred_region
        _
      $region44: #{lstm_seq_forward.1} parent=31 // pred_fallthru
        _
      // Predicated region
      $region45: #{lstm_seq_forward.1} parent=31 // pred_check
        %p436 = pneg %p135
      $region46: #{lstm_seq_forward.1} parent=31 // pred_check_branch
        %438 = sbr.rel (%p436) target = $region48
      $region47: #{lstm_seq_forward.1} parent=31 // pred_region
        %p439 = scmp.lt.s32.totalorder %s19, 0
        %s440 = scalar_select %p439, %s19, 0
        %p441 = scmp.lt.s32.totalorder %s20, 0
        %s442 = scalar_select %p441, %s20, 0
        %s443 = sadd.s32 %s442, %s440
        %s444 = smul.addr %s443, 8
        %s445 = scalar_lea.vmem %s3, %s444
      $region48: #{lstm_seq_forward.1} parent=31 // pred_fallthru
        _
    $region32: #{lstm_seq_forward.1} parent=5 // pred_fallthru
      _
    %p446 = scmp.le.s32.totalorder 2, %s9
    // Predicated region
    $region49: #{lstm_seq_forward.1} parent=5 // pred_check
      %p447 = pneg %p446
    $region50: #{lstm_seq_forward.1} parent=5 // pred_check_branch
      %449 = sbr.rel (%p447) target = $region52
    $region51: #{lstm_seq_forward.1} parent=5 // pred_region
      %s450 = ssub.s32 %s9, 2
    $region52: #{lstm_seq_forward.1} parent=5 // pred_fallthru
      _
  $region6: #{lstm_seq_forward.1} parent=0 // loop_footer
    %s13 = sadd.s32 1, %s9
  $region7: #{lstm_seq_forward.1} parent=0 // loop_footer_branch
    %8 = sbr.rel target = $region3
  $region8: #{lstm_seq_forward.1} parent=0 // loop_exit
    _

</llo_original>
